<compile_context>
chip_gen: v7x
topology: tpu7x:2x2x1
jax: 0.10.0
libtpu: 0.0.40
codegen_flags: <defaults>
</compile_context>

<pallas_src>
import functools

import jax
import jax.numpy as jnp
from jax.experimental import pallas as pl
from jax.experimental.pallas import tpu as pltpu


def _patch_embed_kernel(patches_ref, w_ref, posb_ref, out_ref, *, reps):
    # patches_ref: (TM, PDp)           bf16   one M-tile of flattened patches
    # w_ref:       (PDp, E)            bf16   projection weight (grid-invariant -> resident)
    # posb_ref:    (NP, E) or (TM, E)  f32    pos_embedding + bias
    # out_ref:     (TM, E)
    acc = jnp.dot(patches_ref[...], w_ref[...],
                  preferred_element_type=jnp.float32)            # MXU, f32 accumulate
    if reps == 1:
        out_ref[...] = (acc + posb_ref[...]).astype(out_ref.dtype)
    else:
        # TM = reps * NP: free sublane-split reshape (NP % 8 == 0, E % 128 == 0),
        # single broadcast VPU add against the resident (NP, E) pos+bias table.
        npatch, e = posb_ref.shape
        acc = acc.reshape(reps, npatch, e) + posb_ref[...]
        out_ref[...] = acc.reshape(reps * npatch, e).astype(out_ref.dtype)


def patch_embedding(x, w, b, pos, *, patch_size,
                    compute_dtype=jnp.bfloat16,
                    out_dtype=jnp.float32,
                    target_rows=512,
                    allow_input_fusion=False):
    """x: (B, 1, H, W) f32, w: (p*p, E), b: (E,), pos: (1, NP, E) -> (B, NP, E)."""
    B, C, H, W = x.shape
    if C != 1:
        raise ValueError("PatchEmbedding (as written in PyTorch) is only "
                         "shape-consistent for in_channels=1.")
    p = patch_size
    hp, wp = H // p, W // p
    NP = hp * wp                     # num_patches
    PD = p * p                       # patch_dim (C == 1)
    E = w.shape[1]                   # embed_dim
    M = B * NP

    # --- im2col with the exact torch unfold/view element order (single XLA pass) ---
    patches = x.reshape(B, hp, p, wp, p).transpose(0, 1, 3, 2, 4).reshape(M, PD)

    # Pad the contraction dim to a multiple of 16 (clean bf16 sublane packing).
    PDp = ((PD + 15) // 16) * 16
    if PDp != PD:
        patches = jnp.pad(patches, ((0, 0), (0, PDp - PD)))
        w = jnp.pad(w, ((0, PDp - PD), (0, 0)))

    patches = patches.astype(compute_dtype)   # bf16: half the bytes on dominant streams
    wc = w.astype(compute_dtype)

    # Bias folded into the positional embedding once: (NP, E) f32.
    posb = (pos.reshape(NP, E) + b.reshape(1, E)).astype(jnp.float32)

    in_isz = jnp.dtype(compute_dtype).itemsize
    out_isz = jnp.dtype(out_dtype).itemsize
    vmem_budget = 24 * 1024 * 1024             # per-step working set cap (v7x-safe)

    def tile_bytes(rows, posb_streamed):
        by = 2 * rows * PDp * in_isz + 2 * rows * E * out_isz    # double-buffered tiles
        if posb_streamed:
            by += 2 * rows * E * 4
        return by

    use_broadcast_posb = (NP % 8 == 0) and tile_bytes(NP, False) <= vmem_budget

    if use_broadcast_posb:
        # --- Path A: TM = imgs_per_step * NP, resident (NP, E) pos+bias ---------------
        # Prefer ~target_rows per tile; when B allows, keep grid_m >= 2 (even) so both
        # v7x TensorCores get a step; clamp against the VMEM budget.
        imgs = max(1, min(B, target_rows // NP))
        while B % imgs:
            imgs -= 1
        if B // imgs < 2 <= B:                    # avoid grid=(1,) on multi-image runs
            while imgs > 1 and (B // imgs < 2 or B % imgs):
                imgs -= 1
        while imgs > 1 and tile_bytes(imgs * NP, False) > vmem_budget:
            imgs -= 1
            while imgs > 1 and B % imgs:
                imgs -= 1
        TM = imgs * NP
        reps = imgs
        grid_m = B // imgs
        M_padded = M
        posb_arr = posb                                          # (NP, E), resident
        posb_spec = pl.BlockSpec((NP, E), lambda m: (0, 0))
        resident_bytes = PDp * E * in_isz + NP * E * 4
        vmem_need = resident_bytes + tile_bytes(TM, False)
    else:
        # --- Path B: TM decoupled from NP (mult of 8), streamed (M, E) pos+bias -------
        TM = max(8, (min(target_rows, ((M + 7) // 8) * 8) // 8) * 8)
        while TM > 8 and tile_bytes(TM, True) > vmem_budget:
            TM -= 8
        M_padded = ((M + TM - 1) // TM) * TM
        if M_padded != M:
            patches = jnp.pad(patches, ((0, M_padded - M), (0, 0)))
        posb_arr = jnp.tile(posb, (B, 1))                        # (M, E)
        if M_padded != M:
            posb_arr = jnp.pad(posb_arr, ((0, M_padded - M), (0, 0)))
        reps = 1
        grid_m = M_padded // TM
        posb_spec = pl.BlockSpec((TM, E), lambda m: (m, 0))
        resident_bytes = PDp * E * in_isz
        vmem_need = resident_bytes + tile_bytes(TM, True)

    vmem_limit = int(min(32 * 1024 * 1024, max(4 * 1024 * 1024, 2 * vmem_need)))

    cp_kwargs = dict(dimension_semantics=("parallel",), vmem_limit_bytes=vmem_limit)
    if allow_input_fusion:
        # Let XLA fuse the im2col transpose + pad + bf16 cast into the patches input
        # (removes the HBM round trip of the (M, PDp) intermediate for large images).
        cp_kwargs["allow_input_fusion"] = [True, False, False]

    out = pl.pallas_call(
        functools.partial(_patch_embed_kernel, reps=reps),
        out_shape=jax.ShapeDtypeStruct((M_padded, E), out_dtype),
        grid_spec=pltpu.PrefetchScalarGridSpec(
            num_scalar_prefetch=0,
            grid=(grid_m,),
            in_specs=[
                pl.BlockSpec((TM, PDp), lambda m: (m, 0)),   # patches: streamed M tiles
                pl.BlockSpec((PDp, E), lambda m: (0, 0)),    # weight: resident
                posb_spec,                                   # pos+bias
            ],
            out_specs=pl.BlockSpec((TM, E), lambda m: (m, 0)),
        ),
        # NOTE: for embed_dim > 256 (real ViT), add an N grid axis tiled in multiples
        # of 256 (v6e/v7x MXU width) to keep weight/out tiles VMEM-friendly.
        compiler_params=pltpu.CompilerParams(**cp_kwargs),
    )(patches, wc, posb_arr)

    if M_padded != M:
        out = out[:M]
    return out.reshape(B, NP, E)


if __name__ == "__main__":
    # Module defaults: image 56x56, patch 7, 1 channel, embed 256.
    image_size, patch_size, in_channels, embed_dim = 56, 7, 1, 256
    batch = 8                                              # M = 8*64 = 512 -> 2 tiles of 256
    num_patches = (image_size // patch_size) ** 2          # 64
    patch_dim = in_channels * patch_size * patch_size      # 49

    key = jax.random.PRNGKey(0)
    kx, kw, kb, kp = jax.random.split(key, 4)
    x = jax.random.normal(kx, (batch, in_channels, image_size, image_size), jnp.float32)
    bound = 1.0 / (patch_dim ** 0.5)
    w = jax.random.uniform(kw, (patch_dim, embed_dim), jnp.float32, -bound, bound)
    b = jax.random.uniform(kb, (embed_dim,), jnp.float32, -bound, bound)
    pos = jax.random.normal(kp, (1, num_patches, embed_dim), jnp.float32)

    fn = jax.jit(functools.partial(patch_embedding, patch_size=patch_size))
    out = fn(x, w, b, pos)
    jax.block_until_ready(out)

    # Reference (same math; matmul operands rounded to bf16 like the kernel's MXU inputs).
    hp = image_size // patch_size
    ref_patches = x.reshape(batch, hp, patch_size, hp, patch_size)
    ref_patches = ref_patches.transpose(0, 1, 3, 2, 4).reshape(batch, num_patches, patch_dim)
    pr = ref_patches.astype(jnp.bfloat16).astype(jnp.float32)
    wr = w.astype(jnp.bfloat16).astype(jnp.float32)
    ref = jnp.einsum("bnd,de->bne", pr, wr) + b + pos

    assert out.shape == (batch, num_patches, embed_dim)
    assert out.dtype == jnp.float32
    assert jnp.allclose(out, ref, atol=1e-2, rtol=1e-2), float(jnp.max(jnp.abs(out - ref)))

    print("KERNEL_OK")
</pallas_src>

<mosaic_0001>
module attributes {stable_mosaic.version = 11 : i64} {
  func.func @_patch_embed_kernel(%arg0: i32, %arg1: memref<256x64xbf16, #tpu.memory_space<vmem>>, %arg2: memref<64x256xbf16, #tpu.memory_space<vmem>>, %arg3: memref<64x256xf32, #tpu.memory_space<vmem>>, %arg4: memref<256x256xf32, #tpu.memory_space<vmem>>) attributes {dimension_semantics = [#tpu.dimension_semantics<parallel>], iteration_bounds = array<i64: 2>, scalar_prefetch = 0 : i64, scratch_operands = 0 : i64, tpu.core_type = #tpu.core_type<tc>, window_params = [{transform_indices = @transform_0, window_bounds = array<i64: 256, 64>}, {pipeline_mode = #tpu.pipeline_mode<synchronous>, transform_indices = @transform_1, window_bounds = array<i64: 64, 256>}, {pipeline_mode = #tpu.pipeline_mode<synchronous>, transform_indices = @transform_2, window_bounds = array<i64: 64, 256>}, {transform_indices = @transform_3, window_bounds = array<i64: 256, 256>}]} {
    %c0 = arith.constant 0 : index
    %c0_0 = arith.constant 0 : index
    %0 = vector.load %arg1[%c0, %c0_0] : memref<256x64xbf16, #tpu.memory_space<vmem>>, vector<256x64xbf16>
    %c0_1 = arith.constant 0 : index
    %c0_2 = arith.constant 0 : index
    %1 = vector.load %arg2[%c0_1, %c0_2] : memref<64x256xbf16, #tpu.memory_space<vmem>>, vector<64x256xbf16>
    %cst = arith.constant dense<0.000000e+00> : vector<256x256xf32>
    %2 = tpu.matmul %0, %1, %cst {dimension_numbers = #tpu.dot_dimension_numbers<[1], [0], [0], [1], [0, 0, 1, 1], [], []>} : vector<256x64xbf16>, vector<64x256xbf16>, vector<256x256xf32> -> vector<256x256xf32>
    %3 = vector.shape_cast %2 : vector<256x256xf32> to vector<4x64x256xf32>
    %c0_3 = arith.constant 0 : index
    %c0_4 = arith.constant 0 : index
    %4 = vector.load %arg3[%c0_3, %c0_4] : memref<64x256xf32, #tpu.memory_space<vmem>>, vector<64x256xf32>
    %5 = vector.shape_cast %4 : vector<64x256xf32> to vector<1x64x256xf32>
    %6 = vector.broadcast %5 : vector<1x64x256xf32> to vector<4x64x256xf32>
    %7 = arith.addf %3, %6 : vector<4x64x256xf32>
    %8 = vector.shape_cast %7 : vector<4x64x256xf32> to vector<256x256xf32>
    %c0_5 = arith.constant 0 : index
    %c0_6 = arith.constant 0 : index
    %9 = vector.load %arg4[%c0_5, %c0_6] : memref<256x256xf32, #tpu.memory_space<vmem>>, vector<256x256xf32>
    tpu.vector_store %arg4[%c0_5, %c0_6], %8 {strides = array<i32>} : memref<256x256xf32, #tpu.memory_space<vmem>>, vector<256x256xf32>,
    return
  }
  func.func @transform_0(%arg0: i32) -> (i32, i32) {
    %c0_i32 = arith.constant 0 : i32
    %c0_i32_0 = arith.constant 0 : i32
    return %arg0, %c0_i32 : i32, i32
  }
  func.func @transform_1(%arg0: i32) -> (i32, i32) {
    %c0_i32 = arith.constant 0 : i32
    %c0_i32_0 = arith.constant 0 : i32
    %c0_i32_1 = arith.constant 0 : i32
    return %c0_i32, %c0_i32_0 : i32, i32
  }
  func.func @transform_2(%arg0: i32) -> (i32, i32) {
    %c0_i32 = arith.constant 0 : i32
    %c0_i32_0 = arith.constant 0 : i32
    %c0_i32_1 = arith.constant 0 : i32
    return %c0_i32, %c0_i32_0 : i32, i32
  }
  func.func @transform_3(%arg0: i32) -> (i32, i32) {
    %c0_i32 = arith.constant 0 : i32
    %c0_i32_0 = arith.constant 0 : i32
    return %arg0, %c0_i32 : i32, i32
  }
}

</mosaic_0001>

<llo_original>
// kernel: patch_embedding.1
$region0: #{patch_embedding.1}
  #allocation0 [shape = 'u32[]', space=smem, size = 0x4, offset = 0x4, fixed_abs, tag = 'smem constant byte address 0x4 - core index']
  #allocation1 [shape = 'u32[144,128]{1,0:T(1,128)}', space=vmem, size = 0x12000, scoped, tag = 'internal scratch']
  %s0 = inlined_call_operand.vmem [shape: bf16[512,64], index: 0, kind: input, shape index: {}]
  %s1 = inlined_call_operand.vmem [shape: bf16[64,256], index: 1, kind: input, shape index: {}]
  %s2 = inlined_call_operand.vmem [shape: f32[64,256], index: 2, kind: input, shape index: {}]
  %s3 = inlined_call_operand.hbm [shape: f32[512,256], index: 3, kind: output, shape index: {}]
  %s4 = sld [smem:[#allocation0]]
  $region45: #{patch_embedding.1} parent=0
    _
  %s6 = ssub.s32 1, %s4
  %s7 = scalar_select 0, %s6, %s4
  $region1: #{patch_embedding.1} parent=0
    #allocation2 [shape = 'u8[524288]{0}', space=vmem, size = 0x80000, scoped, tag = 'output window, operand 0']
    #allocation3 [shape = 's32[2]{0}', space=sflag, size = 0x8, scoped, tag = 'scoped memory for patch_embedding.1']
    %8 = vsyncpa [#allocation3], 0
    %s9 = scalar_lea.sflag [#allocation3], 1
    %10 = vsyncpa %s9, 0
    loop: start=0, step=1, limit=4
    $region2: #{patch_embedding.1} parent=1 // loop_pre_header
      _
    $region3: #{patch_embedding.1} parent=1 // loop_header
      %s12 = sphi 0, %s16
      %p13 = scmp.ge.s32.totalorder %s12, 4
      %s22 = sphi 0, %s24
      %s25 = sphi 0, %s22
      %s26 = sphi 0, %s25
      %s42 = sphi 0, %s26
      %s46 = sphi 0, %s46
      %s48 = sphi 0, %s46
      %s49 = sphi 0, %s48
      %s63 = sphi 0, %s49
      %s67 = sphi 0, %s67
      %s69 = sphi 0, %s67
      %s70 = sphi 0, %s69
      %s84 = sphi 0, %s70
      %s90 = sphi 0, %s92
      %s93 = sphi 0, %s90
      %s94 = sphi 0, %s93
      %s110 = sphi 0, %s94
    $region4: #{patch_embedding.1} parent=1 // loop_header_branch
      %15 = sbr.rel (%p13) target = $region8
    $region5: #{patch_embedding.1} parent=1 // loop_body
      %s17 = ssub.s32 %s12, 1
      %s18 = ssub.s32 %s12, 2
      %s19 = sadd.s32 %s12, 1
      %s20 = ssub.s32 %s12, %s19
      %p21 = scmp.eq.s32.totalorder %s20, 0
      %s23 = sadd.s32 %s22, 1
      %s24 = scalar_select %p21, %s22, %s23
      %p27 = pneg %p21
      %p28 = scmp.eq.s32.totalorder %s12, 1
      %p29 = por %p27, %p28
      %p30 = scmp.ne.s32.totalorder %s22, %s25
      %p31 = scmp.eq.s32.totalorder %s12, 0
      %p32 = por %p30, %p31
      %p33 = scmp.ne.s32.totalorder %s22, %s25
      %p34 = scmp.eq.s32.totalorder %s17, 1
      %p35 = por %p33, %p34
      %p36 = scmp.ne.s32.totalorder %s25, %s26
      %p37 = scmp.eq.s32.totalorder %s17, 0
      %p38 = por %p36, %p37
      %p39 = scmp.ne.s32.totalorder %s25, %s26
      %p40 = scmp.eq.s32.totalorder %s18, 1
      %p41 = por %p39, %p40
      %p43 = scmp.ne.s32.totalorder %s26, %s42
      %p44 = scmp.eq.s32.totalorder %s18, 0
      %p45 = por %p43, %p44
      %s47 = sadd.s32 %s46, 1
      %p50 = scmp.eq.s32.totalorder %s12, 1
      %p51 = scmp.ne.s32.totalorder %s46, %s48
      %p52 = scmp.eq.s32.totalorder %s12, 0
      %p53 = por %p51, %p52
      %p54 = scmp.ne.s32.totalorder %s46, %s48
      %p55 = scmp.eq.s32.totalorder %s17, 1
      %p56 = por %p54, %p55
      %p57 = scmp.ne.s32.totalorder %s48, %s49
      %p58 = scmp.eq.s32.totalorder %s17, 0
      %p59 = por %p57, %p58
      %p60 = scmp.ne.s32.totalorder %s48, %s49
      %p61 = scmp.eq.s32.totalorder %s18, 1
      %p62 = por %p60, %p61
      %p64 = scmp.ne.s32.totalorder %s49, %s63
      %p65 = scmp.eq.s32.totalorder %s18, 0
      %p66 = por %p64, %p65
      %s68 = sadd.s32 %s67, 1
      %p71 = scmp.eq.s32.totalorder %s12, 1
      %p72 = scmp.ne.s32.totalorder %s67, %s69
      %p73 = scmp.eq.s32.totalorder %s12, 0
      %p74 = por %p72, %p73
      %p75 = scmp.ne.s32.totalorder %s67, %s69
      %p76 = scmp.eq.s32.totalorder %s17, 1
      %p77 = por %p75, %p76
      %p78 = scmp.ne.s32.totalorder %s69, %s70
      %p79 = scmp.eq.s32.totalorder %s17, 0
      %p80 = por %p78, %p79
      %p81 = scmp.ne.s32.totalorder %s69, %s70
      %p82 = scmp.eq.s32.totalorder %s18, 1
      %p83 = por %p81, %p82
      %p85 = scmp.ne.s32.totalorder %s70, %s84
      %p86 = scmp.eq.s32.totalorder %s18, 0
      %p87 = por %p85, %p86
      %s88 = ssub.s32 %s12, %s19
      %p89 = scmp.eq.s32.totalorder %s88, 0
      %s91 = sadd.s32 %s90, 1
      %s92 = scalar_select %p89, %s90, %s91
      %p95 = pneg %p89
      %p96 = scmp.eq.s32.totalorder %s12, 1
      %p97 = por %p95, %p96
      %p98 = scmp.ne.s32.totalorder %s90, %s93
      %p99 = scmp.eq.s32.totalorder %s12, 0
      %p100 = por %p98, %p99
      %p101 = scmp.ne.s32.totalorder %s90, %s93
      %p102 = scmp.eq.s32.totalorder %s17, 1
      %p103 = por %p101, %p102
      %p104 = scmp.ne.s32.totalorder %s93, %s94
      %p105 = scmp.eq.s32.totalorder %s17, 0
      %p106 = por %p104, %p105
      %p107 = scmp.ne.s32.totalorder %s93, %s94
      %p108 = scmp.eq.s32.totalorder %s18, 1
      %p109 = por %p107, %p108
      %p111 = scmp.ne.s32.totalorder %s94, %s110
      %p112 = scmp.eq.s32.totalorder %s18, 0
      %p113 = por %p111, %p112
      %p114 = scmp.le.s32.totalorder 1, %s12
      %p115 = scmp.lt.s32.totalorder %s12, 3
      %p116 = pnand %p114, %p115
      %p117 = pneg %p116
      // Predicated region
      $region9: #{patch_embedding.1} parent=5 // pred_check
        _
      $region10: #{patch_embedding.1} parent=5 // pred_check_branch
        %119 = sbr.rel (%p116) target = $region12
      $region11: #{patch_embedding.1} parent=5 // pred_region
        %s120 = ssub.s32 %s12, 1
        // Predicated region
        $region13: #{patch_embedding.1} parent=11 // pred_check
          %p121 = pneg %p59
        $region14: #{patch_embedding.1} parent=11 // pred_check_branch
          %123 = sbr.rel (%p121) target = $region16
        $region15: #{patch_embedding.1} parent=11 // pred_region
          _
        $region16: #{patch_embedding.1} parent=11 // pred_fallthru
          _
        // Predicated region
        $region17: #{patch_embedding.1} parent=11 // pred_check
          %p124 = pneg %p80
        $region18: #{patch_embedding.1} parent=11 // pred_check_branch
          %126 = sbr.rel (%p124) target = $region20
        $region19: #{patch_embedding.1} parent=11 // pred_region
          _
        $region20: #{patch_embedding.1} parent=11 // pred_fallthru
          _
      $region12: #{patch_embedding.1} parent=5 // pred_fallthru
        _
      %p127 = scmp.lt.s32.totalorder %s12, 2
      // Predicated region
      $region21: #{patch_embedding.1} parent=5 // pred_check
        %p128 = pneg %p127
      $region22: #{patch_embedding.1} parent=5 // pred_check_branch
        %130 = sbr.rel (%p128) target = $region24
      $region23: #{patch_embedding.1} parent=5 // pred_region
        // Predicated region
        $region25: #{patch_embedding.1} parent=23 // pred_check
          %p131 = pneg %p32
        $region26: #{patch_embedding.1} parent=23 // pred_check_branch
          %133 = sbr.rel (%p131) target = $region28
        $region27: #{patch_embedding.1} parent=23 // pred_region
          %s134 = smul.u32 32, %s12
          %p135 = scmp.lt.s32.totalorder %s134, 63
          %s136 = scalar_select %p135, %s134, 63
          %s137 = smul.addr %s136, 4
          %s138 = scalar_lea.vmem %s0, %s137
          %s139 = smul.u32 32, %s12
        $region28: #{patch_embedding.1} parent=23 // pred_fallthru
          _
      $region24: #{patch_embedding.1} parent=5 // pred_fallthru
        _
      %p140 = scmp.le.s32.totalorder 1, %s12
      %p141 = scmp.lt.s32.totalorder %s12, 3
      %p142 = pnand %p140, %p141
      %p143 = pneg %p142
      // Predicated region
      $region29: #{patch_embedding.1} parent=5 // pred_check
        _
      $region30: #{patch_embedding.1} parent=5 // pred_check_branch
        %145 = sbr.rel (%p142) target = $region32
      $region31: #{patch_embedding.1} parent=5 // pred_region
        %s146 = ssub.s32 %s12, 1
        %s147 = smul.u32 32, %s17
        %p148 = scmp.lt.s32.totalorder %s147, 63
        %s149 = scalar_select %p148, %s147, 63
        %s150 = smul.addr %s149, 4
        %s151 = scalar_lea.vmem %s0, %s150
        %p152 = pneg %p38
        %p153 = pneg %p35
        %p154 = pneg %p59
        %p155 = pneg %p56
        %p156 = pneg %p80
        %p157 = pneg %p77
        %p158 = pneg %p106
        %p159 = pneg %p103
        %s160 = sand.u32 %s93, 1
        %s161 = scalar_lea.sflag [#allocation3], %s160
        %s162 = sand.u32 %s93, 1
        %s163 = smul.addr %s162, 512
        %s164 = scalar_lea.vmem [#allocation2], %s163
        %s165 = smul.u32 32, %s17
        %p166 = scmp.lt.s32.totalorder %s165, 63
        %s167 = scalar_select %p166, %s165, 63
        %s168 = smul.addr %s167, 4
        %s169 = scalar_lea.vmem %s0, %s168
        %s170 = smul.u32 32, %s17
        %s171 = smul.u32 32, %s17
        %v173 = vld [vmem:[%s169] sm:$0xf]
        %v174 = vld [vmem:[%s169 + $0x4] sm:$0xf]
        %v175 = vld [vmem:[%s169 + $0x8] sm:$0xf]
        %v176 = vld [vmem:[%s169 + $0xc] sm:$0xf]
        %v177 = vld [vmem:[%s169 + $0x10] sm:$0xf]
        %v178 = vld [vmem:[%s169 + $0x14] sm:$0xf]
        %v179 = vld [vmem:[%s169 + $0x18] sm:$0xf]
        %v180 = vld [vmem:[%s169 + $0x1c] sm:$0xf]
        %v181 = vld [vmem:[%s169 + $0x20] sm:$0xf]
        %v182 = vld [vmem:[%s169 + $0x24] sm:$0xf]
        %v183 = vld [vmem:[%s169 + $0x28] sm:$0xf]
        %v184 = vld [vmem:[%s169 + $0x2c] sm:$0xf]
        %v185 = vld [vmem:[%s169 + $0x30] sm:$0xf]
        %v186 = vld [vmem:[%s169 + $0x34] sm:$0xf]
        %v187 = vld [vmem:[%s169 + $0x38] sm:$0xf]
        %v188 = vld [vmem:[%s169 + $0x3c] sm:$0xf]
        %v189 = vld [vmem:[%s169 + $0x40] sm:$0xf]
        %v190 = vld [vmem:[%s169 + $0x44] sm:$0xf]
        %v191 = vld [vmem:[%s169 + $0x48] sm:$0xf]
        %v192 = vld [vmem:[%s169 + $0x4c] sm:$0xf]
        %v193 = vld [vmem:[%s169 + $0x50] sm:$0xf]
        %v194 = vld [vmem:[%s169 + $0x54] sm:$0xf]
        %v195 = vld [vmem:[%s169 + $0x58] sm:$0xf]
        %v196 = vld [vmem:[%s169 + $0x5c] sm:$0xf]
        %v197 = vld [vmem:[%s169 + $0x60] sm:$0xf]
        %v198 = vld [vmem:[%s169 + $0x64] sm:$0xf]
        %v199 = vld [vmem:[%s169 + $0x68] sm:$0xf]
        %v200 = vld [vmem:[%s169 + $0x6c] sm:$0xf]
        %v201 = vld [vmem:[%s169 + $0x70] sm:$0xf]
        %v202 = vld [vmem:[%s169 + $0x74] sm:$0xf]
        %v203 = vld [vmem:[%s169 + $0x78] sm:$0xf]
        %v204 = vld [vmem:[%s169 + $0x7c] sm:$0xf]
        %v205 = vld [vmem:[%s1] sm:$0xff]
        %v206 = vld [vmem:[%s1 + $0x8] sm:$0xff]
        %v207 = vld [vmem:[%s1 + $0x10] sm:$0xff]
        %v208 = vld [vmem:[%s1 + $0x18] sm:$0xff]
        %v209 = vld [vmem:[%s1 + $0x20] sm:$0xff]
        %v210 = vld [vmem:[%s1 + $0x28] sm:$0xff]
        %v211 = vld [vmem:[%s1 + $0x30] sm:$0xff]
        %v212 = vld [vmem:[%s1 + $0x38] sm:$0xff]
        %v245 = vunpack.c.l.b16 %v173
        %v246 = vunpack.c.l.b16 %v174
        %v247 = vunpack.c.l.b16 %v175
        %v248 = vunpack.c.l.b16 %v176
        %v249 = vunpack.c.l.b16 %v177
        %v250 = vunpack.c.l.b16 %v178
        %v251 = vunpack.c.l.b16 %v179
        %v252 = vunpack.c.l.b16 %v180
        %v253 = vunpack.c.l.b16 %v181
        %v254 = vunpack.c.l.b16 %v182
        %v255 = vunpack.c.l.b16 %v183
        %v256 = vunpack.c.l.b16 %v184
        %v257 = vunpack.c.l.b16 %v185
        %v258 = vunpack.c.l.b16 %v186
        %v259 = vunpack.c.l.b16 %v187
        %v260 = vunpack.c.l.b16 %v188
        %v261 = vunpack.c.l.b16 %v189
        %v262 = vunpack.c.l.b16 %v190
        %v263 = vunpack.c.l.b16 %v191
        %v264 = vunpack.c.l.b16 %v192
        %v265 = vunpack.c.l.b16 %v193
        %v266 = vunpack.c.l.b16 %v194
        %v267 = vunpack.c.l.b16 %v195
        %v268 = vunpack.c.l.b16 %v196
        %v269 = vunpack.c.l.b16 %v197
        %v270 = vunpack.c.l.b16 %v198
        %v271 = vunpack.c.l.b16 %v199
        %v272 = vunpack.c.l.b16 %v200
        %v273 = vunpack.c.l.b16 %v201
        %v274 = vunpack.c.l.b16 %v202
        %v275 = vunpack.c.l.b16 %v203
        %v276 = vunpack.c.l.b16 %v204
        %v277 = vpack.c.b16 %v246, %v245
        %v278 = vpack.c.b16 %v248, %v247
        %v279 = vpack.c.b16 %v250, %v249
        %v280 = vpack.c.b16 %v252, %v251
        %v281 = vpack.c.b16 %v254, %v253
        %v282 = vpack.c.b16 %v256, %v255
        %v283 = vpack.c.b16 %v258, %v257
        %v284 = vpack.c.b16 %v260, %v259
        %v285 = vpack.c.b16 %v262, %v261
        %v286 = vpack.c.b16 %v264, %v263
        %v287 = vpack.c.b16 %v266, %v265
        %v288 = vpack.c.b16 %v268, %v267
        %v289 = vpack.c.b16 %v270, %v269
        %v290 = vpack.c.b16 %v272, %v271
        %v291 = vpack.c.b16 %v274, %v273
        %v292 = vpack.c.b16 %v276, %v275
        %v301 = vunpack.c.l.b16 %v205
        %v302 = vunpack.c.h.b16 %v205
        %v303 = vunpack.c.l.b16 %v206
        %v304 = vunpack.c.h.b16 %v206
        %v305 = vunpack.c.l.b16 %v207
        %v306 = vunpack.c.h.b16 %v207
        %v307 = vunpack.c.l.b16 %v208
        %v308 = vunpack.c.h.b16 %v208
        %v309 = vunpack.c.l.b16 %v209
        %v310 = vunpack.c.h.b16 %v209
        %v311 = vunpack.c.l.b16 %v210
        %v312 = vunpack.c.h.b16 %v210
        %v313 = vunpack.c.l.b16 %v211
        %v314 = vunpack.c.h.b16 %v211
        %v315 = vunpack.c.l.b16 %v212
        %v316 = vunpack.c.h.b16 %v212
        %v317 = vpack.c.b16 %v303, %v301
        %v318 = vpack.c.b16 %v304, %v302
        %v319 = vpack.c.b16 %v307, %v305
        %v320 = vpack.c.b16 %v308, %v306
        %v321 = vpack.c.b16 %v311, %v309
        %v322 = vpack.c.b16 %v312, %v310
        %v323 = vpack.c.b16 %v315, %v313
        %v324 = vpack.c.b16 %v316, %v314
        %vm333 = vcmask 523264
        %v335 = vsel %vm333, %v277, 0
        %v338 = vsel %vm333, %v278, 0
        %v341 = vsel %vm333, %v279, 0
        %v344 = vsel %vm333, %v280, 0
        %v347 = vsel %vm333, %v281, 0
        %v350 = vsel %vm333, %v282, 0
        %v353 = vsel %vm333, %v283, 0
        %v356 = vsel %vm333, %v284, 0
        %v359 = vsel %vm333, %v285, 0
        %v362 = vsel %vm333, %v286, 0
        %v365 = vsel %vm333, %v287, 0
        %v368 = vsel %vm333, %v288, 0
        %v371 = vsel %vm333, %v289, 0
        %v374 = vsel %vm333, %v290, 0
        %v377 = vsel %vm333, %v291, 0
        %v380 = vsel %vm333, %v292, 0
        %382 = vmatprep.subr.bf16.mxu0 %v318
        %383 = vmatpush1.bf16.msra.mxu0 %v317
        %384 = vmatprep.subr.bf16.mxu0 %v320
        %385 = vmatpush1.bf16.msra.mxu0 %v319
        %386 = vmatprep.subr.bf16.mxu0 %v322
        %387 = vmatpush1.bf16.msra.mxu0 %v321
        %388 = vmatprep.subr.bf16.mxu0 %v324
        %389 = vmatpush1.bf16.msra.mxu0 %v323
        %390 = vmatprep.subr.bf16.mxu0 0
        %391 = vmatpush1.bf16.msra.mxu0 0
        %392 = vmatprep.subr.bf16.mxu0 0
        %393 = vmatpush1.bf16.msra.mxu0 0
        %394 = vmatprep.subr.bf16.mxu0 0
        %395 = vmatpush1.bf16.msra.mxu0 0
        %396 = vmatprep.subr.bf16.mxu0 0
        %397 = vmatpush1.bf16.msra.mxu0 0
        %398 = vmatprep.subr.bf16.mxu0 0
        %399 = vmatpush1.bf16.msra.mxu0 0
        %400 = vmatprep.subr.bf16.mxu0 0
        %401 = vmatpush1.bf16.msra.mxu0 0
        %402 = vmatprep.subr.bf16.mxu0 0
        %403 = vmatpush1.bf16.msra.mxu0 0
        %404 = vmatprep.subr.bf16.mxu0 0
        %405 = vmatpush1.bf16.msra.mxu0 0
        %406 = vmatprep.subr.bf16.mxu0 0
        %407 = vmatpush1.bf16.msra.mxu0 0
        %408 = vmatprep.subr.bf16.mxu0 0
        %409 = vmatpush1.bf16.msra.mxu0 0
        %410 = vmatprep.subr.bf16.mxu0 0
        %411 = vmatpush1.bf16.msra.mxu0 0
        %412 = vmatprep.subr.bf16.mxu0 0
        %413 = vmatpush1.bf16.msra.mxu0 0
        %414 = vmatprep.mubr.bf16.mxu0 0
        %415 = vmatmul.mubr.bf16.gmra.mrb[0].mxu0 %v335
        %v416 = vpop.f32.mrb[0].mxu0
        %v417 = vadd.f32 0.0, %v416
        %v418 = vpop.f32.mrb[0].mxu0
        %v419 = vadd.f32 0.0, %v418
        %v420 = vpop.f32.mrb[0].mxu0
        %v421 = vadd.f32 0.0, %v420
        %v422 = vpop.f32.mrb[0].mxu0
        %v423 = vadd.f32 0.0, %v422
        %424 = vmatprep.mubr.bf16.mxu0 0
        %425 = vmatmul.mubr.bf16.gmra.mrb[0].mxu0 %v338
        %v426 = vpop.f32.mrb[0].mxu0
        %v427 = vadd.f32 0.0, %v426
        %v428 = vpop.f32.mrb[0].mxu0
        %v429 = vadd.f32 0.0, %v428
        %v430 = vpop.f32.mrb[0].mxu0
        %v431 = vadd.f32 0.0, %v430
        %v432 = vpop.f32.mrb[0].mxu0
        %v433 = vadd.f32 0.0, %v432
        %434 = vmatprep.mubr.bf16.mxu0 0
        %435 = vmatmul.mubr.bf16.gmra.mrb[0].mxu0 %v341
        %v436 = vpop.f32.mrb[0].mxu0
        %v437 = vadd.f32 0.0, %v436
        %v438 = vpop.f32.mrb[0].mxu0
        %v439 = vadd.f32 0.0, %v438
        %v440 = vpop.f32.mrb[0].mxu0
        %v441 = vadd.f32 0.0, %v440
        %v442 = vpop.f32.mrb[0].mxu0
        %v443 = vadd.f32 0.0, %v442
        %444 = vmatprep.mubr.bf16.mxu0 0
        %445 = vmatmul.mubr.bf16.gmra.mrb[0].mxu0 %v344
        %v446 = vpop.f32.mrb[0].mxu0
        %v447 = vadd.f32 0.0, %v446
        %v448 = vpop.f32.mrb[0].mxu0
        %v449 = vadd.f32 0.0, %v448
        %v450 = vpop.f32.mrb[0].mxu0
        %v451 = vadd.f32 0.0, %v450
        %v452 = vpop.f32.mrb[0].mxu0
        %v453 = vadd.f32 0.0, %v452
        %454 = vmatprep.mubr.bf16.mxu0 0
        %455 = vmatmul.mubr.bf16.gmra.mrb[0].mxu0 %v347
        %v456 = vpop.f32.mrb[0].mxu0
        %v457 = vadd.f32 0.0, %v456
        %v458 = vpop.f32.mrb[0].mxu0
        %v459 = vadd.f32 0.0, %v458
        %v460 = vpop.f32.mrb[0].mxu0
        %v461 = vadd.f32 0.0, %v460
        %v462 = vpop.f32.mrb[0].mxu0
        %v463 = vadd.f32 0.0, %v462
        %464 = vmatprep.mubr.bf16.mxu0 0
        %465 = vmatmul.mubr.bf16.gmra.mrb[0].mxu0 %v350
        %v466 = vpop.f32.mrb[0].mxu0
        %v467 = vadd.f32 0.0, %v466
        %v468 = vpop.f32.mrb[0].mxu0
        %v469 = vadd.f32 0.0, %v468
        %v470 = vpop.f32.mrb[0].mxu0
        %v471 = vadd.f32 0.0, %v470
        %v472 = vpop.f32.mrb[0].mxu0
        %v473 = vadd.f32 0.0, %v472
        %474 = vmatprep.mubr.bf16.mxu0 0
        %475 = vmatmul.mubr.bf16.gmra.mrb[0].mxu0 %v353
        %v476 = vpop.f32.mrb[0].mxu0
        %v477 = vadd.f32 0.0, %v476
        %v478 = vpop.f32.mrb[0].mxu0
        %v479 = vadd.f32 0.0, %v478
        %v480 = vpop.f32.mrb[0].mxu0
        %v481 = vadd.f32 0.0, %v480
        %v482 = vpop.f32.mrb[0].mxu0
        %v483 = vadd.f32 0.0, %v482
        %484 = vmatprep.mubr.bf16.mxu0 0
        %485 = vmatmul.mubr.bf16.gmra.mrb[0].mxu0 %v356
        %v486 = vpop.f32.mrb[0].mxu0
        %v487 = vadd.f32 0.0, %v486
        %v488 = vpop.f32.mrb[0].mxu0
        %v489 = vadd.f32 0.0, %v488
        %v490 = vpop.f32.mrb[0].mxu0
        %v491 = vadd.f32 0.0, %v490
        %v492 = vpop.f32.mrb[0].mxu0
        %v493 = vadd.f32 0.0, %v492
        %494 = vmatprep.mubr.bf16.mxu0 0
        %495 = vmatmul.mubr.bf16.gmra.mrb[0].mxu0 %v359
        %v496 = vpop.f32.mrb[0].mxu0
        %v497 = vadd.f32 0.0, %v496
        %v498 = vpop.f32.mrb[0].mxu0
        %v499 = vadd.f32 0.0, %v498
        %v500 = vpop.f32.mrb[0].mxu0
        %v501 = vadd.f32 0.0, %v500
        %v502 = vpop.f32.mrb[0].mxu0
        %v503 = vadd.f32 0.0, %v502
        %504 = vmatprep.mubr.bf16.mxu0 0
        %505 = vmatmul.mubr.bf16.gmra.mrb[0].mxu0 %v362
        %v506 = vpop.f32.mrb[0].mxu0
        %v507 = vadd.f32 0.0, %v506
        %v508 = vpop.f32.mrb[0].mxu0
        %v509 = vadd.f32 0.0, %v508
        %v510 = vpop.f32.mrb[0].mxu0
        %v511 = vadd.f32 0.0, %v510
        %v512 = vpop.f32.mrb[0].mxu0
        %v513 = vadd.f32 0.0, %v512
        %514 = vmatprep.mubr.bf16.mxu0 0
        %515 = vmatmul.mubr.bf16.gmra.mrb[0].mxu0 %v365
        %v516 = vpop.f32.mrb[0].mxu0
        %v517 = vadd.f32 0.0, %v516
        %v518 = vpop.f32.mrb[0].mxu0
        %v519 = vadd.f32 0.0, %v518
        %v520 = vpop.f32.mrb[0].mxu0
        %v521 = vadd.f32 0.0, %v520
        %v522 = vpop.f32.mrb[0].mxu0
        %v523 = vadd.f32 0.0, %v522
        %524 = vmatprep.mubr.bf16.mxu0 0
        %525 = vmatmul.mubr.bf16.gmra.mrb[0].mxu0 %v368
        %v526 = vpop.f32.mrb[0].mxu0
        %v527 = vadd.f32 0.0, %v526
        %v528 = vpop.f32.mrb[0].mxu0
        %v529 = vadd.f32 0.0, %v528
        %v530 = vpop.f32.mrb[0].mxu0
        %v531 = vadd.f32 0.0, %v530
        %v532 = vpop.f32.mrb[0].mxu0
        %v533 = vadd.f32 0.0, %v532
        %534 = vmatprep.mubr.bf16.mxu0 0
        %535 = vmatmul.mubr.bf16.gmra.mrb[0].mxu0 %v371
        %v536 = vpop.f32.mrb[0].mxu0
        %v537 = vadd.f32 0.0, %v536
        %v538 = vpop.f32.mrb[0].mxu0
        %v539 = vadd.f32 0.0, %v538
        %v540 = vpop.f32.mrb[0].mxu0
        %v541 = vadd.f32 0.0, %v540
        %v542 = vpop.f32.mrb[0].mxu0
        %v543 = vadd.f32 0.0, %v542
        %544 = vmatprep.mubr.bf16.mxu0 0
        %545 = vmatmul.mubr.bf16.gmra.mrb[0].mxu0 %v374
        %v546 = vpop.f32.mrb[0].mxu0
        %v547 = vadd.f32 0.0, %v546
        %v548 = vpop.f32.mrb[0].mxu0
        %v549 = vadd.f32 0.0, %v548
        %v550 = vpop.f32.mrb[0].mxu0
        %v551 = vadd.f32 0.0, %v550
        %v552 = vpop.f32.mrb[0].mxu0
        %v553 = vadd.f32 0.0, %v552
        %554 = vmatprep.mubr.bf16.mxu0 0
        %555 = vmatmul.mubr.bf16.gmra.mrb[0].mxu0 %v377
        %v556 = vpop.f32.mrb[0].mxu0
        %v557 = vadd.f32 0.0, %v556
        %v558 = vpop.f32.mrb[0].mxu0
        %v559 = vadd.f32 0.0, %v558
        %v560 = vpop.f32.mrb[0].mxu0
        %v561 = vadd.f32 0.0, %v560
        %v562 = vpop.f32.mrb[0].mxu0
        %v563 = vadd.f32 0.0, %v562
        %564 = vmatprep.mubr.bf16.mxu0 0
        %565 = vmatmul.mubr.bf16.gmra.mrb[0].mxu0 %v380
        %v566 = vpop.f32.mrb[0].mxu0
        %v567 = vadd.f32 0.0, %v566
        %v568 = vpop.f32.mrb[0].mxu0
        %v569 = vadd.f32 0.0, %v568
        %v570 = vpop.f32.mrb[0].mxu0
        %v571 = vadd.f32 0.0, %v570
        %v572 = vpop.f32.mrb[0].mxu0
        %v573 = vadd.f32 0.0, %v572
        %574 = vdwg.mxu0
        %v575 = vld [vmem:[%s2] sm:$0xff]
        %v576 = vld [vmem:[%s2 + $0x8] sm:$0xff]
        %v577 = vld [vmem:[%s2 + $0x10] sm:$0xff]
        %v578 = vld [vmem:[%s2 + $0x18] sm:$0xff]
        %v579 = vld [vmem:[%s2 + $0x20] sm:$0xff]
        %v580 = vld [vmem:[%s2 + $0x28] sm:$0xff]
        %v581 = vld [vmem:[%s2 + $0x30] sm:$0xff]
        %v582 = vld [vmem:[%s2 + $0x38] sm:$0xff]
        %v583 = vld [vmem:[%s2 + $0x40] sm:$0xff]
        %v584 = vld [vmem:[%s2 + $0x48] sm:$0xff]
        %v585 = vld [vmem:[%s2 + $0x50] sm:$0xff]
        %v586 = vld [vmem:[%s2 + $0x58] sm:$0xff]
        %v587 = vld [vmem:[%s2 + $0x60] sm:$0xff]
        %v588 = vld [vmem:[%s2 + $0x68] sm:$0xff]
        %v589 = vld [vmem:[%s2 + $0x70] sm:$0xff]
        %v590 = vld [vmem:[%s2 + $0x78] sm:$0xff]
        %v591 = vadd.f32 %v417, %v575
        %v592 = vadd.f32 %v419, %v576
        %v593 = vadd.f32 %v421, %v577
        %v594 = vadd.f32 %v423, %v578
        %v595 = vadd.f32 %v427, %v579
        %v596 = vadd.f32 %v429, %v580
        %v597 = vadd.f32 %v431, %v581
        %v598 = vadd.f32 %v433, %v582
        %v599 = vadd.f32 %v437, %v583
        %v600 = vadd.f32 %v439, %v584
        %v601 = vadd.f32 %v441, %v585
        %v602 = vadd.f32 %v443, %v586
        %v603 = vadd.f32 %v447, %v587
        %v604 = vadd.f32 %v449, %v588
        %v605 = vadd.f32 %v451, %v589
        %v606 = vadd.f32 %v453, %v590
        %v607 = vadd.f32 %v457, %v575
        %v608 = vadd.f32 %v459, %v576
        %v609 = vadd.f32 %v461, %v577
        %v610 = vadd.f32 %v463, %v578
        %v611 = vadd.f32 %v467, %v579
        %v612 = vadd.f32 %v469, %v580
        %v613 = vadd.f32 %v471, %v581
        %v614 = vadd.f32 %v473, %v582
        %v615 = vadd.f32 %v477, %v583
        %v616 = vadd.f32 %v479, %v584
        %v617 = vadd.f32 %v481, %v585
        %v618 = vadd.f32 %v483, %v586
        %v619 = vadd.f32 %v487, %v587
        %v620 = vadd.f32 %v489, %v588
        %v621 = vadd.f32 %v491, %v589
        %v622 = vadd.f32 %v493, %v590
        %v623 = vadd.f32 %v497, %v575
        %v624 = vadd.f32 %v499, %v576
        %v625 = vadd.f32 %v501, %v577
        %v626 = vadd.f32 %v503, %v578
        %v627 = vadd.f32 %v507, %v579
        %v628 = vadd.f32 %v509, %v580
        %v629 = vadd.f32 %v511, %v581
        %v630 = vadd.f32 %v513, %v582
        %v631 = vadd.f32 %v517, %v583
        %v632 = vadd.f32 %v519, %v584
        %v633 = vadd.f32 %v521, %v585
        %v634 = vadd.f32 %v523, %v586
        %v635 = vadd.f32 %v527, %v587
        %v636 = vadd.f32 %v529, %v588
        %v637 = vadd.f32 %v531, %v589
        %v638 = vadd.f32 %v533, %v590
        %v639 = vadd.f32 %v537, %v575
        %v640 = vadd.f32 %v539, %v576
        %v641 = vadd.f32 %v541, %v577
        %v642 = vadd.f32 %v543, %v578
        %v643 = vadd.f32 %v547, %v579
        %v644 = vadd.f32 %v549, %v580
        %v645 = vadd.f32 %v551, %v581
        %v646 = vadd.f32 %v553, %v582
        %v647 = vadd.f32 %v557, %v583
        %v648 = vadd.f32 %v559, %v584
        %v649 = vadd.f32 %v561, %v585
        %v650 = vadd.f32 %v563, %v586
        %v651 = vadd.f32 %v567, %v587
        %v652 = vadd.f32 %v569, %v588
        %v653 = vadd.f32 %v571, %v589
        %v654 = vadd.f32 %v573, %v590
        %655 = vst [vmem:[%s164] sm:$0xff] %v591
        %656 = vst [vmem:[%s164 + $0x8] sm:$0xff] %v592
        %657 = vst [vmem:[%s164 + $0x10] sm:$0xff] %v593
        %658 = vst [vmem:[%s164 + $0x18] sm:$0xff] %v594
        %659 = vst [vmem:[%s164 + $0x20] sm:$0xff] %v595
        %660 = vst [vmem:[%s164 + $0x28] sm:$0xff] %v596
        %661 = vst [vmem:[%s164 + $0x30] sm:$0xff] %v597
        %662 = vst [vmem:[%s164 + $0x38] sm:$0xff] %v598
        %663 = vst [vmem:[%s164 + $0x40] sm:$0xff] %v599
        %664 = vst [vmem:[%s164 + $0x48] sm:$0xff] %v600
        %665 = vst [vmem:[%s164 + $0x50] sm:$0xff] %v601
        %666 = vst [vmem:[%s164 + $0x58] sm:$0xff] %v602
        %667 = vst [vmem:[%s164 + $0x60] sm:$0xff] %v603
        %668 = vst [vmem:[%s164 + $0x68] sm:$0xff] %v604
        %669 = vst [vmem:[%s164 + $0x70] sm:$0xff] %v605
        %670 = vst [vmem:[%s164 + $0x78] sm:$0xff] %v606
        %671 = vst [vmem:[%s164 + $0x80] sm:$0xff] %v607
        %672 = vst [vmem:[%s164 + $0x88] sm:$0xff] %v608
        %673 = vst [vmem:[%s164 + $0x90] sm:$0xff] %v609
        %674 = vst [vmem:[%s164 + $0x98] sm:$0xff] %v610
        %675 = vst [vmem:[%s164 + $0xa0] sm:$0xff] %v611
        %676 = vst [vmem:[%s164 + $0xa8] sm:$0xff] %v612
        %677 = vst [vmem:[%s164 + $0xb0] sm:$0xff] %v613
        %678 = vst [vmem:[%s164 + $0xb8] sm:$0xff] %v614
        %679 = vst [vmem:[%s164 + $0xc0] sm:$0xff] %v615
        %680 = vst [vmem:[%s164 + $0xc8] sm:$0xff] %v616
        %681 = vst [vmem:[%s164 + $0xd0] sm:$0xff] %v617
        %682 = vst [vmem:[%s164 + $0xd8] sm:$0xff] %v618
        %683 = vst [vmem:[%s164 + $0xe0] sm:$0xff] %v619
        %684 = vst [vmem:[%s164 + $0xe8] sm:$0xff] %v620
        %685 = vst [vmem:[%s164 + $0xf0] sm:$0xff] %v621
        %686 = vst [vmem:[%s164 + $0xf8] sm:$0xff] %v622
        %687 = vst [vmem:[%s164 + $0x100] sm:$0xff] %v623
        %688 = vst [vmem:[%s164 + $0x108] sm:$0xff] %v624
        %689 = vst [vmem:[%s164 + $0x110] sm:$0xff] %v625
        %690 = vst [vmem:[%s164 + $0x118] sm:$0xff] %v626
        %691 = vst [vmem:[%s164 + $0x120] sm:$0xff] %v627
        %692 = vst [vmem:[%s164 + $0x128] sm:$0xff] %v628
        %693 = vst [vmem:[%s164 + $0x130] sm:$0xff] %v629
        %694 = vst [vmem:[%s164 + $0x138] sm:$0xff] %v630
        %695 = vst [vmem:[%s164 + $0x140] sm:$0xff] %v631
        %696 = vst [vmem:[%s164 + $0x148] sm:$0xff] %v632
        %697 = vst [vmem:[%s164 + $0x150] sm:$0xff] %v633
        %698 = vst [vmem:[%s164 + $0x158] sm:$0xff] %v634
        %699 = vst [vmem:[%s164 + $0x160] sm:$0xff] %v635
        %700 = vst [vmem:[%s164 + $0x168] sm:$0xff] %v636
        %701 = vst [vmem:[%s164 + $0x170] sm:$0xff] %v637
        %702 = vst [vmem:[%s164 + $0x178] sm:$0xff] %v638
        %703 = vst [vmem:[%s164 + $0x180] sm:$0xff] %v639
        %704 = vst [vmem:[%s164 + $0x188] sm:$0xff] %v640
        %705 = vst [vmem:[%s164 + $0x190] sm:$0xff] %v641
        %706 = vst [vmem:[%s164 + $0x198] sm:$0xff] %v642
        %707 = vst [vmem:[%s164 + $0x1a0] sm:$0xff] %v643
        %708 = vst [vmem:[%s164 + $0x1a8] sm:$0xff] %v644
        %709 = vst [vmem:[%s164 + $0x1b0] sm:$0xff] %v645
        %710 = vst [vmem:[%s164 + $0x1b8] sm:$0xff] %v646
        %711 = vst [vmem:[%s164 + $0x1c0] sm:$0xff] %v647
        %712 = vst [vmem:[%s164 + $0x1c8] sm:$0xff] %v648
        %713 = vst [vmem:[%s164 + $0x1d0] sm:$0xff] %v649
        %714 = vst [vmem:[%s164 + $0x1d8] sm:$0xff] %v650
        %715 = vst [vmem:[%s164 + $0x1e0] sm:$0xff] %v651
        %716 = vst [vmem:[%s164 + $0x1e8] sm:$0xff] %v652
        %717 = vst [vmem:[%s164 + $0x1f0] sm:$0xff] %v653
        %718 = vst [vmem:[%s164 + $0x1f8] sm:$0xff] %v654
        %s719 = sand.u32 %s93, 1
        %s720 = scalar_lea.sflag [#allocation3], %s719
        %s721 = sand.u32 %s93, 1
        %s722 = smul.addr %s721, 512
        %s723 = scalar_lea.vmem [#allocation2], %s722
        // Predicated region
        $region33: #{patch_embedding.1} parent=31 // pred_check
          %p724 = pneg %p103
        $region34: #{patch_embedding.1} parent=31 // pred_check_branch
          %726 = sbr.rel (%p724) target = $region36
        $region35: #{patch_embedding.1} parent=31 // pred_region
          %s727 = smul.u32 32, %s17
          %s729 = ssub.s32 8192, 8192
          %730 = vsyncadd %s720, %s729
          %s731 = smul.addr %s727, 2
          %s732 = smul.addr %s731, 128
          %s733 = scalar_lea.hbm %s3, %s732
          %s734 = sshll.u32 %s723, 4
          %s735 = int_to_ptr.vmem [resolvable:$true] %s734
          %740 = dma.vmem_to_hbm [thread:$0]  %s735, 8192, %s733, %s720, 256, 256, 16
        $region36: #{patch_embedding.1} parent=31 // pred_fallthru
          _
      $region32: #{patch_embedding.1} parent=5 // pred_fallthru
        _
      %p741 = scmp.le.s32.totalorder 2, %s12
      // Predicated region
      $region37: #{patch_embedding.1} parent=5 // pred_check
        %p742 = pneg %p741
      $region38: #{patch_embedding.1} parent=5 // pred_check_branch
        %744 = sbr.rel (%p742) target = $region40
      $region39: #{patch_embedding.1} parent=5 // pred_region
        %s745 = ssub.s32 %s12, 2
        // Predicated region
        $region41: #{patch_embedding.1} parent=39 // pred_check
          %p746 = pneg %p109
        $region42: #{patch_embedding.1} parent=39 // pred_check_branch
          %748 = sbr.rel (%p746) target = $region44
        $region43: #{patch_embedding.1} parent=39 // pred_region
          %s749 = sand.u32 %s94, 1
          %s750 = scalar_lea.sflag [#allocation3], %s749
          %s751 = sand.u32 %s94, 1
          %s752 = smul.addr %s751, 512
          %s753 = scalar_lea.vmem [#allocation2], %s752
          %754 = dma.done %s750, 8192
        $region44: #{patch_embedding.1} parent=39 // pred_fallthru
          _
      $region40: #{patch_embedding.1} parent=5 // pred_fallthru
        _
    $region6: #{patch_embedding.1} parent=1 // loop_footer
      %s16 = sadd.s32 1, %s12
    $region7: #{patch_embedding.1} parent=1 // loop_footer_branch
      %11 = sbr.rel target = $region3
    $region8: #{patch_embedding.1} parent=1 // loop_exit
      _
    %755 = vsyncpa [#allocation3], 1
    %s756 = scalar_lea.sflag [#allocation3], 1
    %757 = vsyncpa %s756, 1

</llo_original>
